<compile_context>
chip_gen: v6e
topology: v6e:2x2x1
jax: 0.10.0
libtpu: 0.0.40
codegen_flags: <defaults>
</compile_context>

<pallas_src>
import jax
import jax.numpy as jnp
from jax.experimental import pallas as pl
from jax.experimental.pallas import tpu as pltpu


def _bitfc_kernel(x_ref, w1_ref, b1_ref, w2_ref, b2_ref, w3_ref, b3_ref, o_ref):
    # x arrives as int8 0/1 bits straight from HBM; the int8->bf16 convert is
    # cheap VPU work hidden under the next tile's DMA.
    x = x_ref[...].astype(jnp.bfloat16)

    # Layer 1: (TB,S)bf16 @ (S,H)bf16 -> f32 accumulate; bias + ReLU in f32 (VPU).
    h1 = jnp.dot(x, w1_ref[...], preferred_element_type=jnp.float32)
    h1 = jnp.maximum(h1 + b1_ref[...], 0.0)

    # Layer 2: bf16 MXU matmul, f32 accumulate, f32 bias + ReLU.
    h2 = jnp.dot(h1.astype(jnp.bfloat16), w2_ref[...],
                 preferred_element_type=jnp.float32)
    h2 = jnp.maximum(h2 + b2_ref[...], 0.0)

    # Layer 3 on the (otherwise idle) MXU instead of an XLU lane reduce.
    y = jnp.dot(h2.astype(jnp.bfloat16), w3_ref[...],
                preferred_element_type=jnp.float32)
    o_ref[...] = (y + b3_ref[...]).astype(o_ref.dtype)


def _round_up(a, m):
    return ((a + m - 1) // m) * m


def bitfc_forward(x, params, *, batch_tile=4096, vmem_limit_bytes=None):
    """Fused BitFC forward.

    x:      (B, seq_length).  Supply int8 (0/1 bits) to avoid an extra HBM
            pass; any other dtype is cast to int8 here (values must be 0/1).
    params: (w1, b1, w2, b2, w3, b3), weights stored (in_features, out_features)
            i.e. PyTorch's Linear.weight transposed, so y = x @ W + b.
    Returns logits of shape (B, 1), float32.
    """
    w1, b1, w2, b2, w3, b3 = params
    B, S = x.shape
    H = w1.shape[1]
    assert w1.shape == (S, H) and w2.shape == (H, H) and w3.shape[0] == H

    if x.dtype != jnp.int8:
        # Costs one extra HBM pass over x; callers should store the bits int8.
        x = x.astype(jnp.int8)

    # Tile selection: multiple of 128 (int8 sublane packing / MXU row dim),
    # >= 2 grid steps whenever B allows it (v7x: 2 TCs share the parallel
    # grid axis), capped at batch_tile.
    tile = int(max(128, min(int(batch_tile), _round_up(pl.cdiv(B, 2), 128))))
    num_tiles = pl.cdiv(B, tile)          # last tile may be ragged (masked)

    if vmem_limit_bytes is None and tile >= 8192:
        # ~16+ MiB working set exceeds v5e's 16 MiB default scoped VMEM.
        vmem_limit_bytes = 64 << 20

    # Weights are tiny; cast once to bf16 (MXU operands).  Biases stay f32.
    w1_bf = w1.astype(jnp.bfloat16)
    w2_bf = w2.astype(jnp.bfloat16)
    w3_bf = w3.reshape(H, 1).astype(jnp.bfloat16)
    b1_2d = b1.reshape(1, H).astype(jnp.float32)
    b2_2d = b2.reshape(1, H).astype(jnp.float32)
    b3_2d = b3.reshape(1, 1).astype(jnp.float32)

    cost = pl.CostEstimate(
        flops=2 * B * (S * H + H * H + H),
        transcendentals=0,
        bytes_accessed=(B * S                               # x (int8)
                        + (S * H + H * H + H) * 2           # W1, W2, W3 (bf16)
                        + (2 * H + 1) * 4                   # b1, b2, b3 (f32)
                        + B * 4),                           # output (f32)
    )

    compiler_kwargs = dict(dimension_semantics=("parallel",))
    if vmem_limit_bytes is not None:
        compiler_kwargs["vmem_limit_bytes"] = int(vmem_limit_bytes)

    return pl.pallas_call(
        _bitfc_kernel,
        out_shape=jax.ShapeDtypeStruct((B, 1), jnp.float32),
        grid_spec=pltpu.PrefetchScalarGridSpec(
            num_scalar_prefetch=0,
            grid=(num_tiles,),
            in_specs=[
                pl.BlockSpec((tile, S), lambda i: (i, 0)),   # x tile (int8)
                pl.BlockSpec((S, H), lambda i: (0, 0)),      # W1 (bf16)
                pl.BlockSpec((1, H), lambda i: (0, 0)),      # b1 (f32)
                pl.BlockSpec((H, H), lambda i: (0, 0)),      # W2 (bf16)
                pl.BlockSpec((1, H), lambda i: (0, 0)),      # b2 (f32)
                pl.BlockSpec((H, 1), lambda i: (0, 0)),      # W3 column (bf16)
                pl.BlockSpec((1, 1), lambda i: (0, 0)),      # b3 (f32)
            ],
            out_specs=pl.BlockSpec((tile, 1), lambda i: (i, 0)),
        ),
        compiler_params=pltpu.CompilerParams(**compiler_kwargs),
        cost_estimate=cost,
    )(x, w1_bf, b1_2d, w2_bf, b2_2d, w3_bf, b3_2d)


def init_bitfc_params(key, seq_length=256, hidden_size=128):
    """nn.Linear-style init (uniform +/- 1/sqrt(fan_in)); weights stored as
    (in_features, out_features) so the kernel computes x @ W + b."""
    k1, k2, k3, k4, k5, k6 = jax.random.split(key, 6)

    def lin(kw, kb, fan_in, fan_out):
        bound = 1.0 / jnp.sqrt(jnp.float32(fan_in))
        w = jax.random.uniform(kw, (fan_in, fan_out), jnp.float32, -bound, bound)
        b = jax.random.uniform(kb, (fan_out,), jnp.float32, -bound, bound)
        return w, b

    w1, b1 = lin(k1, k2, seq_length, hidden_size)
    w2, b2 = lin(k3, k4, hidden_size, hidden_size)
    w3, b3 = lin(k5, k6, hidden_size, 1)
    return (w1, b1, w2, b2, w3, b3)


def bitfc_reference_f32(x, params):
    w1, b1, w2, b2, w3, b3 = params
    h1 = jnp.maximum(x @ w1 + b1.reshape(1, -1), 0.0)
    h2 = jnp.maximum(h1 @ w2 + b2.reshape(1, -1), 0.0)
    return h2 @ w3.reshape(-1, 1) + b3.reshape(1, 1)


def bitfc_reference_bf16(x, params):
    """Reference applying the same bf16 MXU-operand casts as the kernel."""
    w1, b1, w2, b2, w3, b3 = params
    h1 = jnp.maximum(
        jnp.dot(x.astype(jnp.bfloat16), w1.astype(jnp.bfloat16),
                preferred_element_type=jnp.float32) + b1.reshape(1, -1), 0.0)
    h2 = jnp.maximum(
        jnp.dot(h1.astype(jnp.bfloat16), w2.astype(jnp.bfloat16),
                preferred_element_type=jnp.float32) + b2.reshape(1, -1), 0.0)
    y = jnp.dot(h2.astype(jnp.bfloat16), w3.reshape(-1, 1).astype(jnp.bfloat16),
                preferred_element_type=jnp.float32)
    return y + b3.reshape(1, 1)


if __name__ == "__main__":
    key = jax.random.PRNGKey(0)
    kp, kx = jax.random.split(key)

    seq_length = 256   # module defaults
    hidden_size = 128
    batch = 200        # small; not a multiple of the tile -> exercises the
                       # ragged final block and a 2-step grid (tile shrinks to 128)

    params = init_bitfc_params(kp, seq_length, hidden_size)
    # The dataset's bits, supplied in the kernel's preferred int8 form.
    bits = jax.random.bernoulli(kx, 0.5, (batch, seq_length)).astype(jnp.int8)

    logits = bitfc_forward(bits, params)
    logits = jax.block_until_ready(logits)
    assert logits.shape == (batch, 1), logits.shape
    assert bool(jnp.all(jnp.isfinite(logits)))

    x_f32 = bits.astype(jnp.float32)

    # Tight check against a reference using the same bf16 MXU-operand casts.
    ref_bf16 = bitfc_reference_bf16(x_f32, params)
    err_bf16 = float(jnp.max(jnp.abs(logits - ref_bf16)))
    assert jnp.allclose(logits, ref_bf16, atol=2e-3, rtol=2e-3), err_bf16

    # Loose sanity check against the pure-f32 math of the PyTorch module.
    ref_f32 = bitfc_reference_f32(x_f32, params)
    err_f32 = float(jnp.max(jnp.abs(logits - ref_f32)))
    assert jnp.allclose(logits, ref_f32, atol=1e-1, rtol=1e-1), err_f32

    print("KERNEL_OK")
</pallas_src>

<mosaic_0001>
module attributes {stable_mosaic.version = 11 : i64} {
  func.func @_bitfc_kernel(%arg0: i32, %arg1: memref<128x256xi8, #tpu.memory_space<vmem>>, %arg2: memref<256x128xbf16, #tpu.memory_space<vmem>>, %arg3: memref<1x128xf32, #tpu.memory_space<vmem>>, %arg4: memref<128x128xbf16, #tpu.memory_space<vmem>>, %arg5: memref<1x128xf32, #tpu.memory_space<vmem>>, %arg6: memref<128x1xbf16, #tpu.memory_space<vmem>>, %arg7: memref<1x1xf32, #tpu.memory_space<vmem>>, %arg8: memref<128x1xf32, #tpu.memory_space<vmem>>) attributes {dimension_semantics = [#tpu.dimension_semantics<parallel>], iteration_bounds = array<i64: 2>, scalar_prefetch = 0 : i64, scratch_operands = 0 : i64, tpu.core_type = #tpu.core_type<tc>, window_params = [{transform_indices = @transform_0, window_bounds = array<i64: 128, 256>}, {pipeline_mode = #tpu.pipeline_mode<synchronous>, transform_indices = @transform_1, window_bounds = array<i64: 256, 128>}, {pipeline_mode = #tpu.pipeline_mode<synchronous>, transform_indices = @transform_2, window_bounds = array<i64: 1, 128>}, {pipeline_mode = #tpu.pipeline_mode<synchronous>, transform_indices = @transform_3, window_bounds = array<i64: 128, 128>}, {pipeline_mode = #tpu.pipeline_mode<synchronous>, transform_indices = @transform_4, window_bounds = array<i64: 1, 128>}, {pipeline_mode = #tpu.pipeline_mode<synchronous>, transform_indices = @transform_5, window_bounds = array<i64: 128, 1>}, {pipeline_mode = #tpu.pipeline_mode<synchronous>, transform_indices = @transform_6, window_bounds = array<i64: 1, 1>}, {transform_indices = @transform_7, window_bounds = array<i64: 128, 1>}]} {
    %c0 = arith.constant 0 : index
    %c0_0 = arith.constant 0 : index
    %0 = vector.load %arg1[%c0, %c0_0] : memref<128x256xi8, #tpu.memory_space<vmem>>, vector<128x256xi8>
    %1 = arith.sitofp %0 : vector<128x256xi8> to vector<128x256xbf16>
    %c0_1 = arith.constant 0 : index
    %c0_2 = arith.constant 0 : index
    %2 = vector.load %arg2[%c0_1, %c0_2] : memref<256x128xbf16, #tpu.memory_space<vmem>>, vector<256x128xbf16>
    %cst = arith.constant dense<0.000000e+00> : vector<128x128xf32>
    %3 = tpu.matmul %1, %2, %cst {dimension_numbers = #tpu.dot_dimension_numbers<[1], [0], [0], [1], [0, 0, 1, 1], [], []>} : vector<128x256xbf16>, vector<256x128xbf16>, vector<128x128xf32> -> vector<128x128xf32>
    %c0_3 = arith.constant 0 : index
    %c0_4 = arith.constant 0 : index
    %4 = vector.load %arg3[%c0_3, %c0_4] : memref<1x128xf32, #tpu.memory_space<vmem>>, vector<1x128xf32>
    %5 = vector.broadcast %4 : vector<1x128xf32> to vector<128x128xf32>
    %6 = arith.addf %3, %5 : vector<128x128xf32>
    %cst_5 = arith.constant 0.000000e+00 : f32
    %7 = vector.broadcast %cst_5 : f32 to vector<128x128xf32>
    %8 = arith.maximumf %6, %7 : vector<128x128xf32>
    %9 = arith.truncf %8 : vector<128x128xf32> to vector<128x128xbf16>
    %c0_6 = arith.constant 0 : index
    %c0_7 = arith.constant 0 : index
    %10 = vector.load %arg4[%c0_6, %c0_7] : memref<128x128xbf16, #tpu.memory_space<vmem>>, vector<128x128xbf16>
    %cst_8 = arith.constant dense<0.000000e+00> : vector<128x128xf32>
    %11 = tpu.matmul %9, %10, %cst_8 {dimension_numbers = #tpu.dot_dimension_numbers<[1], [0], [0], [1], [0, 0, 1, 1], [], []>} : vector<128x128xbf16>, vector<128x128xbf16>, vector<128x128xf32> -> vector<128x128xf32>
    %c0_9 = arith.constant 0 : index
    %c0_10 = arith.constant 0 : index
    %12 = vector.load %arg5[%c0_9, %c0_10] : memref<1x128xf32, #tpu.memory_space<vmem>>, vector<1x128xf32>
    %13 = vector.broadcast %12 : vector<1x128xf32> to vector<128x128xf32>
    %14 = arith.addf %11, %13 : vector<128x128xf32>
    %cst_11 = arith.constant 0.000000e+00 : f32
    %15 = vector.broadcast %cst_11 : f32 to vector<128x128xf32>
    %16 = arith.maximumf %14, %15 : vector<128x128xf32>
    %17 = arith.truncf %16 : vector<128x128xf32> to vector<128x128xbf16>
    %c0_12 = arith.constant 0 : index
    %c0_13 = arith.constant 0 : index
    %18 = vector.load %arg6[%c0_12, %c0_13] : memref<128x1xbf16, #tpu.memory_space<vmem>>, vector<128x1xbf16>
    %cst_14 = arith.constant dense<0.000000e+00> : vector<128x1xf32>
    %19 = tpu.matmul %17, %18, %cst_14 {dimension_numbers = #tpu.dot_dimension_numbers<[1], [0], [0], [1], [0, 0, 1, 1], [], []>} : vector<128x128xbf16>, vector<128x1xbf16>, vector<128x1xf32> -> vector<128x1xf32>
    %c0_15 = arith.constant 0 : index
    %c0_16 = arith.constant 0 : index
    %20 = vector.load %arg7[%c0_15, %c0_16] : memref<1x1xf32, #tpu.memory_space<vmem>>, vector<1x1xf32>
    %21 = vector.broadcast %20 : vector<1x1xf32> to vector<128x1xf32>
    %22 = arith.addf %19, %21 : vector<128x1xf32>
    %c0_17 = arith.constant 0 : index
    %c0_18 = arith.constant 0 : index
    %23 = vector.load %arg8[%c0_17, %c0_18] : memref<128x1xf32, #tpu.memory_space<vmem>>, vector<128x1xf32>
    tpu.vector_store %arg8[%c0_17, %c0_18], %22 {strides = array<i32>} : memref<128x1xf32, #tpu.memory_space<vmem>>, vector<128x1xf32>,
    return
  }
  func.func @transform_0(%arg0: i32) -> (i32, i32) {
    %c0_i32 = arith.constant 0 : i32
    %c0_i32_0 = arith.constant 0 : i32
    return %arg0, %c0_i32 : i32, i32
  }
  func.func @transform_1(%arg0: i32) -> (i32, i32) {
    %c0_i32 = arith.constant 0 : i32
    %c0_i32_0 = arith.constant 0 : i32
    %c0_i32_1 = arith.constant 0 : i32
    return %c0_i32, %c0_i32_0 : i32, i32
  }
  func.func @transform_2(%arg0: i32) -> (i32, i32) {
    %c0_i32 = arith.constant 0 : i32
    %c0_i32_0 = arith.constant 0 : i32
    %c0_i32_1 = arith.constant 0 : i32
    return %c0_i32, %c0_i32_0 : i32, i32
  }
  func.func @transform_3(%arg0: i32) -> (i32, i32) {
    %c0_i32 = arith.constant 0 : i32
    %c0_i32_0 = arith.constant 0 : i32
    %c0_i32_1 = arith.constant 0 : i32
    return %c0_i32, %c0_i32_0 : i32, i32
  }
  func.func @transform_4(%arg0: i32) -> (i32, i32) {
    %c0_i32 = arith.constant 0 : i32
    %c0_i32_0 = arith.constant 0 : i32
    %c0_i32_1 = arith.constant 0 : i32
    return %c0_i32, %c0_i32_0 : i32, i32
  }
  func.func @transform_5(%arg0: i32) -> (i32, i32) {
    %c0_i32 = arith.constant 0 : i32
    %c0_i32_0 = arith.constant 0 : i32
    %c0_i32_1 = arith.constant 0 : i32
    return %c0_i32, %c0_i32_0 : i32, i32
  }
  func.func @transform_6(%arg0: i32) -> (i32, i32) {
    %c0_i32 = arith.constant 0 : i32
    %c0_i32_0 = arith.constant 0 : i32
    %c0_i32_1 = arith.constant 0 : i32
    return %c0_i32, %c0_i32_0 : i32, i32
  }
  func.func @transform_7(%arg0: i32) -> (i32, i32) {
    %c0_i32 = arith.constant 0 : i32
    %c0_i32_0 = arith.constant 0 : i32
    return %arg0, %c0_i32 : i32, i32
  }
}

</mosaic_0001>

<llo_original>
// kernel: tpu_custom_call.1
$region0: #{tpu_custom_call.1}
  #allocation0 [shape = 'u32[]', space=smem, size = 0x4, offset = 0x4, fixed_abs, tag = 'smem constant byte address 0x4 - core index']
  #allocation1 [shape = 'u32[144,128]{1,0:T(1,128)}', space=vmem, size = 0x12000, scoped, tag = 'internal scratch']
  #allocation2 [shape = 'f32[1,1]{1,0:T(1,128)S(1)}', space=vmem, size = 0x200, scoped, tag = 'scoped memory for tpu_custom_call.1']
  %s0 = inlined_call_operand.hbm [shape: s8[200,256], index: 0, kind: input, shape index: {}]
  %s1 = inlined_call_operand.hbm [shape: bf16[256,128], index: 1, kind: input, shape index: {}]
  %s2 = inlined_call_operand.vmem [shape: f32[1,128], index: 2, kind: input, shape index: {}]
  %s3 = inlined_call_operand.vmem [shape: bf16[128,128], index: 3, kind: input, shape index: {}]
  %s4 = inlined_call_operand.vmem [shape: f32[1,128], index: 4, kind: input, shape index: {}]
  %s5 = inlined_call_operand.vmem [shape: bf16[128,1], index: 5, kind: input, shape index: {}]
  %s6 = inlined_call_operand.<no memory space> [shape: f32[1,1], index: 6, kind: input, shape index: {}]
  %s7 = inlined_call_operand.vmem [shape: f32[200,1], index: 7, kind: output, shape index: {}]
  %s8 = sld [smem:[#allocation0]]
  $region117: #{tpu_custom_call.1} parent=0
    _
  %s10 = ssub.s32 1, %s8
  %s11 = scalar_select 0, %s10, %s8
  %v12 = vstv %s6
  %13 = vst [vmem:[#allocation2] sm:$0x1] %v12
  $region1: #{tpu_custom_call.1} parent=0
    #allocation3 [shape = 'u8[65536]{0}', space=vmem, size = 0x10000, scoped, tag = 'input window, operand 0']
    #allocation4 [shape = 's32[2]{0}', space=sflag, size = 0x8, scoped, tag = 'scoped memory for tpu_custom_call.1']
    #allocation5 [shape = 'u8[65536]{0}', space=vmem, size = 0x10000, scoped, tag = 'input window, operand 1, single buffered']
    #allocation6 [shape = 's32[1]{0}', space=sflag, size = 0x4, scoped, tag = 'scoped memory for tpu_custom_call.1']
    #allocation7 [shape = 'u8[131072]{0}', space=vmem, size = 0x20000, scoped, tag = 'output window, operand 0']
    %14 = vsyncpa [#allocation4], 0
    %s15 = scalar_lea.sflag [#allocation4], 1
    %16 = vsyncpa %s15, 0
    %17 = vsyncpa [#allocation6], 0
    loop: start=0, step=1, limit=4
    $region2: #{tpu_custom_call.1} parent=1 // loop_pre_header
      _
    $region3: #{tpu_custom_call.1} parent=1 // loop_header
      %s19 = sphi 0, %s23
      %p20 = scmp.ge.s32.totalorder %s19, 4
      %s29 = sphi 0, %s31
      %s32 = sphi 0, %s29
      %s33 = sphi 0, %s32
      %s49 = sphi 0, %s33
      %s53 = sphi 0, %s53
      %s55 = sphi 0, %s53
      %s56 = sphi 0, %s55
      %s70 = sphi 0, %s56
      %s74 = sphi 0, %s74
      %s76 = sphi 0, %s74
      %s77 = sphi 0, %s76
      %s91 = sphi 0, %s77
      %s95 = sphi 0, %s95
      %s97 = sphi 0, %s95
      %s98 = sphi 0, %s97
      %s112 = sphi 0, %s98
      %s116 = sphi 0, %s116
      %s118 = sphi 0, %s116
      %s119 = sphi 0, %s118
      %s133 = sphi 0, %s119
      %s137 = sphi 0, %s137
      %s139 = sphi 0, %s137
      %s140 = sphi 0, %s139
      %s154 = sphi 0, %s140
      %s158 = sphi 0, %s158
      %s160 = sphi 0, %s158
      %s161 = sphi 0, %s160
      %s175 = sphi 0, %s161
      %s181 = sphi 0, %s183
      %s184 = sphi 0, %s181
      %s185 = sphi 0, %s184
      %s201 = sphi 0, %s185
    $region4: #{tpu_custom_call.1} parent=1 // loop_header_branch
      %22 = sbr.rel (%p20) target = $region8
    $region5: #{tpu_custom_call.1} parent=1 // loop_body
      %s24 = ssub.s32 %s19, 1
      %s25 = ssub.s32 %s19, 2
      %s26 = sadd.s32 %s19, 1
      %s27 = ssub.s32 %s19, %s26
      %p28 = scmp.eq.s32.totalorder %s27, 0
      %s30 = sadd.s32 %s29, 1
      %s31 = scalar_select %p28, %s29, %s30
      %p34 = pneg %p28
      %p35 = scmp.eq.s32.totalorder %s19, 1
      %p36 = por %p34, %p35
      %p37 = scmp.ne.s32.totalorder %s29, %s32
      %p38 = scmp.eq.s32.totalorder %s19, 0
      %p39 = por %p37, %p38
      %p40 = scmp.ne.s32.totalorder %s29, %s32
      %p41 = scmp.eq.s32.totalorder %s24, 1
      %p42 = por %p40, %p41
      %p43 = scmp.ne.s32.totalorder %s32, %s33
      %p44 = scmp.eq.s32.totalorder %s24, 0
      %p45 = por %p43, %p44
      %p46 = scmp.ne.s32.totalorder %s32, %s33
      %p47 = scmp.eq.s32.totalorder %s25, 1
      %p48 = por %p46, %p47
      %p50 = scmp.ne.s32.totalorder %s33, %s49
      %p51 = scmp.eq.s32.totalorder %s25, 0
      %p52 = por %p50, %p51
      %s54 = sadd.s32 %s53, 1
      %p57 = scmp.eq.s32.totalorder %s19, 1
      %p58 = scmp.ne.s32.totalorder %s53, %s55
      %p59 = scmp.eq.s32.totalorder %s19, 0
      %p60 = por %p58, %p59
      %p61 = scmp.ne.s32.totalorder %s53, %s55
      %p62 = scmp.eq.s32.totalorder %s24, 1
      %p63 = por %p61, %p62
      %p64 = scmp.ne.s32.totalorder %s55, %s56
      %p65 = scmp.eq.s32.totalorder %s24, 0
      %p66 = por %p64, %p65
      %p67 = scmp.ne.s32.totalorder %s55, %s56
      %p68 = scmp.eq.s32.totalorder %s25, 1
      %p69 = por %p67, %p68
      %p71 = scmp.ne.s32.totalorder %s56, %s70
      %p72 = scmp.eq.s32.totalorder %s25, 0
      %p73 = por %p71, %p72
      %s75 = sadd.s32 %s74, 1
      %p78 = scmp.eq.s32.totalorder %s19, 1
      %p79 = scmp.ne.s32.totalorder %s74, %s76
      %p80 = scmp.eq.s32.totalorder %s19, 0
      %p81 = por %p79, %p80
      %p82 = scmp.ne.s32.totalorder %s74, %s76
      %p83 = scmp.eq.s32.totalorder %s24, 1
      %p84 = por %p82, %p83
      %p85 = scmp.ne.s32.totalorder %s76, %s77
      %p86 = scmp.eq.s32.totalorder %s24, 0
      %p87 = por %p85, %p86
      %p88 = scmp.ne.s32.totalorder %s76, %s77
      %p89 = scmp.eq.s32.totalorder %s25, 1
      %p90 = por %p88, %p89
      %p92 = scmp.ne.s32.totalorder %s77, %s91
      %p93 = scmp.eq.s32.totalorder %s25, 0
      %p94 = por %p92, %p93
      %s96 = sadd.s32 %s95, 1
      %p99 = scmp.eq.s32.totalorder %s19, 1
      %p100 = scmp.ne.s32.totalorder %s95, %s97
      %p101 = scmp.eq.s32.totalorder %s19, 0
      %p102 = por %p100, %p101
      %p103 = scmp.ne.s32.totalorder %s95, %s97
      %p104 = scmp.eq.s32.totalorder %s24, 1
      %p105 = por %p103, %p104
      %p106 = scmp.ne.s32.totalorder %s97, %s98
      %p107 = scmp.eq.s32.totalorder %s24, 0
      %p108 = por %p106, %p107
      %p109 = scmp.ne.s32.totalorder %s97, %s98
      %p110 = scmp.eq.s32.totalorder %s25, 1
      %p111 = por %p109, %p110
      %p113 = scmp.ne.s32.totalorder %s98, %s112
      %p114 = scmp.eq.s32.totalorder %s25, 0
      %p115 = por %p113, %p114
      %s117 = sadd.s32 %s116, 1
      %p120 = scmp.eq.s32.totalorder %s19, 1
      %p121 = scmp.ne.s32.totalorder %s116, %s118
      %p122 = scmp.eq.s32.totalorder %s19, 0
      %p123 = por %p121, %p122
      %p124 = scmp.ne.s32.totalorder %s116, %s118
      %p125 = scmp.eq.s32.totalorder %s24, 1
      %p126 = por %p124, %p125
      %p127 = scmp.ne.s32.totalorder %s118, %s119
      %p128 = scmp.eq.s32.totalorder %s24, 0
      %p129 = por %p127, %p128
      %p130 = scmp.ne.s32.totalorder %s118, %s119
      %p131 = scmp.eq.s32.totalorder %s25, 1
      %p132 = por %p130, %p131
      %p134 = scmp.ne.s32.totalorder %s119, %s133
      %p135 = scmp.eq.s32.totalorder %s25, 0
      %p136 = por %p134, %p135
      %s138 = sadd.s32 %s137, 1
      %p141 = scmp.eq.s32.totalorder %s19, 1
      %p142 = scmp.ne.s32.totalorder %s137, %s139
      %p143 = scmp.eq.s32.totalorder %s19, 0
      %p144 = por %p142, %p143
      %p145 = scmp.ne.s32.totalorder %s137, %s139
      %p146 = scmp.eq.s32.totalorder %s24, 1
      %p147 = por %p145, %p146
      %p148 = scmp.ne.s32.totalorder %s139, %s140
      %p149 = scmp.eq.s32.totalorder %s24, 0
      %p150 = por %p148, %p149
      %p151 = scmp.ne.s32.totalorder %s139, %s140
      %p152 = scmp.eq.s32.totalorder %s25, 1
      %p153 = por %p151, %p152
      %p155 = scmp.ne.s32.totalorder %s140, %s154
      %p156 = scmp.eq.s32.totalorder %s25, 0
      %p157 = por %p155, %p156
      %s159 = sadd.s32 %s158, 1
      %p162 = scmp.eq.s32.totalorder %s19, 1
      %p163 = scmp.ne.s32.totalorder %s158, %s160
      %p164 = scmp.eq.s32.totalorder %s19, 0
      %p165 = por %p163, %p164
      %p166 = scmp.ne.s32.totalorder %s158, %s160
      %p167 = scmp.eq.s32.totalorder %s24, 1
      %p168 = por %p166, %p167
      %p169 = scmp.ne.s32.totalorder %s160, %s161
      %p170 = scmp.eq.s32.totalorder %s24, 0
      %p171 = por %p169, %p170
      %p172 = scmp.ne.s32.totalorder %s160, %s161
      %p173 = scmp.eq.s32.totalorder %s25, 1
      %p174 = por %p172, %p173
      %p176 = scmp.ne.s32.totalorder %s161, %s175
      %p177 = scmp.eq.s32.totalorder %s25, 0
      %p178 = por %p176, %p177
      %s179 = ssub.s32 %s19, %s26
      %p180 = scmp.eq.s32.totalorder %s179, 0
      %s182 = sadd.s32 %s181, 1
      %s183 = scalar_select %p180, %s181, %s182
      %p186 = pneg %p180
      %p187 = scmp.eq.s32.totalorder %s19, 1
      %p188 = por %p186, %p187
      %p189 = scmp.ne.s32.totalorder %s181, %s184
      %p190 = scmp.eq.s32.totalorder %s19, 0
      %p191 = por %p189, %p190
      %p192 = scmp.ne.s32.totalorder %s181, %s184
      %p193 = scmp.eq.s32.totalorder %s24, 1
      %p194 = por %p192, %p193
      %p195 = scmp.ne.s32.totalorder %s184, %s185
      %p196 = scmp.eq.s32.totalorder %s24, 0
      %p197 = por %p195, %p196
      %p198 = scmp.ne.s32.totalorder %s184, %s185
      %p199 = scmp.eq.s32.totalorder %s25, 1
      %p200 = por %p198, %p199
      %p202 = scmp.ne.s32.totalorder %s185, %s201
      %p203 = scmp.eq.s32.totalorder %s25, 0
      %p204 = por %p202, %p203
      %p205 = scmp.le.s32.totalorder 1, %s19
      %p206 = scmp.lt.s32.totalorder %s19, 3
      %p207 = pnand %p205, %p206
      %p208 = pneg %p207
      // Predicated region
      $region9: #{tpu_custom_call.1} parent=5 // pred_check
        _
      $region10: #{tpu_custom_call.1} parent=5 // pred_check_branch
        %210 = sbr.rel (%p207) target = $region12
      $region11: #{tpu_custom_call.1} parent=5 // pred_region
        %s211 = ssub.s32 %s19, 1
        // Predicated region
        $region13: #{tpu_custom_call.1} parent=11 // pred_check
          %p212 = pneg %p66
        $region14: #{tpu_custom_call.1} parent=11 // pred_check_branch
          %214 = sbr.rel (%p212) target = $region16
        $region15: #{tpu_custom_call.1} parent=11 // pred_region
          %s216 = ssub.s32 2048, 2048
          %217 = vsyncadd [#allocation6], %s216
          %s218 = sshll.u32 [#allocation5], 4
          %s219 = int_to_ptr.vmem [resolvable:$true] %s218
          %224 = dma.hbm_to_vmem [thread:$0]  %s1, 2048, %s219, [#allocation6], 64, 64, 4
        $region16: #{tpu_custom_call.1} parent=11 // pred_fallthru
          _
        // Predicated region
        $region17: #{tpu_custom_call.1} parent=11 // pred_check
          %p225 = pneg %p87
        $region18: #{tpu_custom_call.1} parent=11 // pred_check_branch
          %227 = sbr.rel (%p225) target = $region20
        $region19: #{tpu_custom_call.1} parent=11 // pred_region
          _
        $region20: #{tpu_custom_call.1} parent=11 // pred_fallthru
          _
        // Predicated region
        $region21: #{tpu_custom_call.1} parent=11 // pred_check
          %p228 = pneg %p108
        $region22: #{tpu_custom_call.1} parent=11 // pred_check_branch
          %230 = sbr.rel (%p228) target = $region24
        $region23: #{tpu_custom_call.1} parent=11 // pred_region
          _
        $region24: #{tpu_custom_call.1} parent=11 // pred_fallthru
          _
        // Predicated region
        $region25: #{tpu_custom_call.1} parent=11 // pred_check
          %p231 = pneg %p129
        $region26: #{tpu_custom_call.1} parent=11 // pred_check_branch
          %233 = sbr.rel (%p231) target = $region28
        $region27: #{tpu_custom_call.1} parent=11 // pred_region
          _
        $region28: #{tpu_custom_call.1} parent=11 // pred_fallthru
          _
        // Predicated region
        $region29: #{tpu_custom_call.1} parent=11 // pred_check
          %p234 = pneg %p150
        $region30: #{tpu_custom_call.1} parent=11 // pred_check_branch
          %236 = sbr.rel (%p234) target = $region32
        $region31: #{tpu_custom_call.1} parent=11 // pred_region
          _
        $region32: #{tpu_custom_call.1} parent=11 // pred_fallthru
          _
        // Predicated region
        $region33: #{tpu_custom_call.1} parent=11 // pred_check
          %p237 = pneg %p171
        $region34: #{tpu_custom_call.1} parent=11 // pred_check_branch
          %239 = sbr.rel (%p237) target = $region36
        $region35: #{tpu_custom_call.1} parent=11 // pred_region
          _
        $region36: #{tpu_custom_call.1} parent=11 // pred_fallthru
          _
      $region12: #{tpu_custom_call.1} parent=5 // pred_fallthru
        _
      %p240 = scmp.lt.s32.totalorder %s19, 2
      // Predicated region
      $region37: #{tpu_custom_call.1} parent=5 // pred_check
        %p241 = pneg %p240
      $region38: #{tpu_custom_call.1} parent=5 // pred_check_branch
        %243 = sbr.rel (%p241) target = $region40
      $region39: #{tpu_custom_call.1} parent=5 // pred_region
        // Predicated region
        $region41: #{tpu_custom_call.1} parent=39 // pred_check
          %p244 = pneg %p39
        $region42: #{tpu_custom_call.1} parent=39 // pred_check_branch
          %246 = sbr.rel (%p244) target = $region44
        $region43: #{tpu_custom_call.1} parent=39 // pred_region
          %s247 = sand.u32 %s29, 1
          %s248 = scalar_lea.sflag [#allocation4], %s247
          %s249 = sand.u32 %s29, 1
          %s250 = smul.addr %s249, 64
          %s251 = scalar_lea.vmem [#allocation3], %s250
          %s252 = smul.u32 16, %s19
          %s253 = ssub.s32 25, %s252
          %p254 = scmp.lt.s32.totalorder %s253, 16
          %s255 = scalar_select %p254, %s253, 16
          %s256 = smul.u32 32, %s255
          %s257 = smul.u32 %s256, 2
          %s259 = ssub.s32 1024, %s257
          %260 = vsyncadd %s248, %s259
          %p261 = scmp.ne.s32.totalorder 0, %s257
          %s262 = smul.addr %s252, 2
          %s263 = smul.addr %s262, 32
          %s264 = scalar_lea.hbm %s0, %s263
          %s265 = smul.u32 4, %s255
          %s266 = sshll.u32 %s251, 4
          %s267 = int_to_ptr.vmem [resolvable:$true] %s266
          %s268 = sshll.u32 %s265, 4
          %272 = dma.hbm_to_vmem [thread:$0]  (%p261), %s264, %s268, %s267, %s248, 64, 64, 4
        $region44: #{tpu_custom_call.1} parent=39 // pred_fallthru
          _
      $region40: #{tpu_custom_call.1} parent=5 // pred_fallthru
        _
      %p273 = scmp.le.s32.totalorder 1, %s19
      %p274 = scmp.lt.s32.totalorder %s19, 3
      %p275 = pnand %p273, %p274
      %p276 = pneg %p275
      // Predicated region
      $region45: #{tpu_custom_call.1} parent=5 // pred_check
        _
      $region46: #{tpu_custom_call.1} parent=5 // pred_check_branch
        %278 = sbr.rel (%p275) target = $region48
      $region47: #{tpu_custom_call.1} parent=5 // pred_region
        %s279 = ssub.s32 %s19, 1
        %s280 = sand.u32 %s32, 1
        %s281 = scalar_lea.sflag [#allocation4], %s280
        %s282 = sand.u32 %s32, 1
        %s283 = smul.addr %s282, 64
        %s284 = scalar_lea.vmem [#allocation3], %s283
        // Predicated region
        $region49: #{tpu_custom_call.1} parent=47 // pred_check
          %p285 = pneg %p45
        $region50: #{tpu_custom_call.1} parent=47 // pred_check_branch
          %287 = sbr.rel (%p285) target = $region52
        $region51: #{tpu_custom_call.1} parent=47 // pred_region
          %288 = dma.done %s281, 1024
        $region52: #{tpu_custom_call.1} parent=47 // pred_fallthru
          _
        // Predicated region
        $region53: #{tpu_custom_call.1} parent=47 // pred_check
          %p289 = pneg %p66
        $region54: #{tpu_custom_call.1} parent=47 // pred_check_branch
          %291 = sbr.rel (%p289) target = $region56
        $region55: #{tpu_custom_call.1} parent=47 // pred_region
          %292 = dma.done [#allocation6], 2048
        $region56: #{tpu_custom_call.1} parent=47 // pred_fallthru
          _
        %s293 = sand.u32 %s32, 1
        %s294 = scalar_lea.sflag [#allocation4], %s293
        %s295 = sand.u32 %s32, 1
        %s296 = smul.addr %s295, 64
        %s297 = scalar_lea.vmem [#allocation3], %s296
        %p298 = pneg %p45
        %p299 = pneg %p42
        %p300 = pneg %p66
        %p301 = pneg %p63
        %p302 = pneg %p87
        %p303 = pneg %p84
        %p304 = pneg %p108
        %p305 = pneg %p105
        %p306 = pneg %p129
        %p307 = pneg %p126
        %p308 = pneg %p150
        %p309 = pneg %p147
        %p310 = pneg %p171
        %p311 = pneg %p168
        %p312 = pneg %p197
        %p313 = pneg %p194
        %s314 = sand.u32 %s184, 1
        %s315 = sand.u32 %s184, 1
        %s316 = smul.addr %s315, 128
        %s317 = scalar_lea.vmem [#allocation7], %s316
        %s318 = smul.u32 16, %s24
        %s319 = ssub.s32 25, %s318
        %p320 = scmp.lt.s32.totalorder %s319, 16
        %s321 = scalar_select %p320, %s319, 16
        %s322 = smul.u32 32, %s321
        %s323 = smul.u32 %s322, 2
        %s324 = smul.u32 16, %s24
        %s325 = ssub.s32 25, %s324
        %p326 = scmp.lt.s32.totalorder %s325, 16
        %s327 = scalar_select %p326, %s325, 16
        %s328 = smul.u32 128, %s327
        %v330 = vld [vmem:[%s284] sm:$0xf]
        %v331 = vld [vmem:[%s284 + $0x4] sm:$0xf]
        %v332 = vld [vmem:[%s284 + $0x8] sm:$0xf]
        %v333 = vld [vmem:[%s284 + $0xc] sm:$0xf]
        %v334 = vld [vmem:[%s284 + $0x10] sm:$0xf]
        %v335 = vld [vmem:[%s284 + $0x14] sm:$0xf]
        %v336 = vld [vmem:[%s284 + $0x18] sm:$0xf]
        %v337 = vld [vmem:[%s284 + $0x1c] sm:$0xf]
        %v338 = vld [vmem:[%s284 + $0x20] sm:$0xf]
        %v339 = vld [vmem:[%s284 + $0x24] sm:$0xf]
        %v340 = vld [vmem:[%s284 + $0x28] sm:$0xf]
        %v341 = vld [vmem:[%s284 + $0x2c] sm:$0xf]
        %v342 = vld [vmem:[%s284 + $0x30] sm:$0xf]
        %v343 = vld [vmem:[%s284 + $0x34] sm:$0xf]
        %v344 = vld [vmem:[%s284 + $0x38] sm:$0xf]
        %v345 = vld [vmem:[%s284 + $0x3c] sm:$0xf]
        %v346 = vunpack.c.l.s8.bf16 %v330
        %v347 = vunpack.c.l.s8.bf16 %v331
        %v348 = vunpack.c.l.s8.bf16 %v332
        %v349 = vunpack.c.l.s8.bf16 %v333
        %v350 = vunpack.c.l.s8.bf16 %v334
        %v351 = vunpack.c.l.s8.bf16 %v335
        %v352 = vunpack.c.l.s8.bf16 %v336
        %v353 = vunpack.c.l.s8.bf16 %v337
        %v354 = vunpack.c.l.s8.bf16 %v338
        %v355 = vunpack.c.l.s8.bf16 %v339
        %v356 = vunpack.c.l.s8.bf16 %v340
        %v357 = vunpack.c.l.s8.bf16 %v341
        %v358 = vunpack.c.l.s8.bf16 %v342
        %v359 = vunpack.c.l.s8.bf16 %v343
        %v360 = vunpack.c.l.s8.bf16 %v344
        %v361 = vunpack.c.l.s8.bf16 %v345
        %v362 = vld [vmem:[#allocation5] sm:$0xf]
        %v363 = vld [vmem:[#allocation5 + $0x4] sm:$0xf]
        %v364 = vld [vmem:[#allocation5 + $0x8] sm:$0xf]
        %v365 = vld [vmem:[#allocation5 + $0xc] sm:$0xf]
        %v366 = vld [vmem:[#allocation5 + $0x10] sm:$0xf]
        %v367 = vld [vmem:[#allocation5 + $0x14] sm:$0xf]
        %v368 = vld [vmem:[#allocation5 + $0x18] sm:$0xf]
        %v369 = vld [vmem:[#allocation5 + $0x1c] sm:$0xf]
        %v370 = vld [vmem:[#allocation5 + $0x20] sm:$0xf]
        %v371 = vld [vmem:[#allocation5 + $0x24] sm:$0xf]
        %v372 = vld [vmem:[#allocation5 + $0x28] sm:$0xf]
        %v373 = vld [vmem:[#allocation5 + $0x2c] sm:$0xf]
        %v374 = vld [vmem:[#allocation5 + $0x30] sm:$0xf]
        %v375 = vld [vmem:[#allocation5 + $0x34] sm:$0xf]
        %v376 = vld [vmem:[#allocation5 + $0x38] sm:$0xf]
        %v377 = vld [vmem:[#allocation5 + $0x3c] sm:$0xf]
        %v378 = vld [vmem:[#allocation5 + $0x40] sm:$0xf]
        %v379 = vld [vmem:[#allocation5 + $0x44] sm:$0xf]
        %v380 = vld [vmem:[#allocation5 + $0x48] sm:$0xf]
        %v381 = vld [vmem:[#allocation5 + $0x4c] sm:$0xf]
        %v382 = vld [vmem:[#allocation5 + $0x50] sm:$0xf]
        %v383 = vld [vmem:[#allocation5 + $0x54] sm:$0xf]
        %v384 = vld [vmem:[#allocation5 + $0x58] sm:$0xf]
        %v385 = vld [vmem:[#allocation5 + $0x5c] sm:$0xf]
        %v386 = vld [vmem:[#allocation5 + $0x60] sm:$0xf]
        %v387 = vld [vmem:[#allocation5 + $0x64] sm:$0xf]
        %v388 = vld [vmem:[#allocation5 + $0x68] sm:$0xf]
        %v389 = vld [vmem:[#allocation5 + $0x6c] sm:$0xf]
        %v390 = vld [vmem:[#allocation5 + $0x70] sm:$0xf]
        %v391 = vld [vmem:[#allocation5 + $0x74] sm:$0xf]
        %v392 = vld [vmem:[#allocation5 + $0x78] sm:$0xf]
        %v393 = vld [vmem:[#allocation5 + $0x7c] sm:$0xf]
        %v394 = vld [vmem:[%s2] sm:$0x1]
        %v396 = vlaneseq
        %v397 = vshrl.u32 %v396, 7
        %v398 = vsub.s32 0, %v397
        %v399 = vrot.slane %v394, %v398
        %v417 = vunpack.c.l.b16 %v346
        %v418 = vunpack.c.h.b16 %v346
        %v419 = vunpack.c.l.b16 %v347
        %v420 = vunpack.c.h.b16 %v347
        %v421 = vunpack.c.l.b16 %v348
        %v422 = vunpack.c.h.b16 %v348
        %v423 = vunpack.c.l.b16 %v349
        %v424 = vunpack.c.h.b16 %v349
        %v425 = vunpack.c.l.b16 %v350
        %v426 = vunpack.c.h.b16 %v350
        %v427 = vunpack.c.l.b16 %v351
        %v428 = vunpack.c.h.b16 %v351
        %v429 = vunpack.c.l.b16 %v352
        %v430 = vunpack.c.h.b16 %v352
        %v431 = vunpack.c.l.b16 %v353
        %v432 = vunpack.c.h.b16 %v353
        %v433 = vunpack.c.l.b16 %v354
        %v434 = vunpack.c.h.b16 %v354
        %v435 = vunpack.c.l.b16 %v355
        %v436 = vunpack.c.h.b16 %v355
        %v437 = vunpack.c.l.b16 %v356
        %v438 = vunpack.c.h.b16 %v356
        %v439 = vunpack.c.l.b16 %v357
        %v440 = vunpack.c.h.b16 %v357
        %v441 = vunpack.c.l.b16 %v358
        %v442 = vunpack.c.h.b16 %v358
        %v443 = vunpack.c.l.b16 %v359
        %v444 = vunpack.c.h.b16 %v359
        %v445 = vunpack.c.l.b16 %v360
        %v446 = vunpack.c.h.b16 %v360
        %v447 = vunpack.c.l.b16 %v361
        %v448 = vunpack.c.h.b16 %v361
        %v449 = vpack.c.b16 %v419, %v417
        %v450 = vpack.c.b16 %v420, %v418
        %v451 = vpack.c.b16 %v423, %v421
        %v452 = vpack.c.b16 %v424, %v422
        %v453 = vpack.c.b16 %v427, %v425
        %v454 = vpack.c.b16 %v428, %v426
        %v455 = vpack.c.b16 %v431, %v429
        %v456 = vpack.c.b16 %v432, %v430
        %v457 = vpack.c.b16 %v435, %v433
        %v458 = vpack.c.b16 %v436, %v434
        %v459 = vpack.c.b16 %v439, %v437
        %v460 = vpack.c.b16 %v440, %v438
        %v461 = vpack.c.b16 %v443, %v441
        %v462 = vpack.c.b16 %v444, %v442
        %v463 = vpack.c.b16 %v447, %v445
        %v464 = vpack.c.b16 %v448, %v446
        %v513 = vunpack.c.l.b16 %v362
        %v514 = vunpack.c.l.b16 %v363
        %v515 = vunpack.c.l.b16 %v364
        %v516 = vunpack.c.l.b16 %v365
        %v517 = vunpack.c.l.b16 %v366
        %v518 = vunpack.c.l.b16 %v367
        %v519 = vunpack.c.l.b16 %v368
        %v520 = vunpack.c.l.b16 %v369
        %v521 = vunpack.c.l.b16 %v370
        %v522 = vunpack.c.l.b16 %v371
        %v523 = vunpack.c.l.b16 %v372
        %v524 = vunpack.c.l.b16 %v373
        %v525 = vunpack.c.l.b16 %v374
        %v526 = vunpack.c.l.b16 %v375
        %v527 = vunpack.c.l.b16 %v376
        %v528 = vunpack.c.l.b16 %v377
        %v529 = vunpack.c.l.b16 %v378
        %v530 = vunpack.c.l.b16 %v379
        %v531 = vunpack.c.l.b16 %v380
        %v532 = vunpack.c.l.b16 %v381
        %v533 = vunpack.c.l.b16 %v382
        %v534 = vunpack.c.l.b16 %v383
        %v535 = vunpack.c.l.b16 %v384
        %v536 = vunpack.c.l.b16 %v385
        %v537 = vunpack.c.l.b16 %v386
        %v538 = vunpack.c.l.b16 %v387
        %v539 = vunpack.c.l.b16 %v388
        %v540 = vunpack.c.l.b16 %v389
        %v541 = vunpack.c.l.b16 %v390
        %v542 = vunpack.c.l.b16 %v391
        %v543 = vunpack.c.l.b16 %v392
        %v544 = vunpack.c.l.b16 %v393
        %v545 = vpack.c.b16 %v514, %v513
        %v546 = vpack.c.b16 %v516, %v515
        %v547 = vpack.c.b16 %v518, %v517
        %v548 = vpack.c.b16 %v520, %v519
        %v549 = vpack.c.b16 %v522, %v521
        %v550 = vpack.c.b16 %v524, %v523
        %v551 = vpack.c.b16 %v526, %v525
        %v552 = vpack.c.b16 %v528, %v527
        %v553 = vpack.c.b16 %v530, %v529
        %v554 = vpack.c.b16 %v532, %v531
        %v555 = vpack.c.b16 %v534, %v533
        %v556 = vpack.c.b16 %v536, %v535
        %v557 = vpack.c.b16 %v538, %v537
        %v558 = vpack.c.b16 %v540, %v539
        %v559 = vpack.c.b16 %v542, %v541
        %v560 = vpack.c.b16 %v544, %v543
        %577 = vmatprep.subr.bf16.mxu0 0
        %578 = vmatpush1.bf16.msra.mxu0 %v552
        %579 = vmatprep.subr.bf16.mxu0 0
        %580 = vmatpush1.bf16.msra.mxu0 %v551
        %581 = vmatprep.subr.bf16.mxu0 0
        %582 = vmatpush1.bf16.msra.mxu0 %v550
        %583 = vmatprep.subr.bf16.mxu0 0
        %584 = vmatpush1.bf16.msra.mxu0 %v549
        %585 = vmatprep.subr.bf16.mxu0 0
        %586 = vmatpush1.bf16.msra.mxu0 %v548
        %587 = vmatprep.subr.bf16.mxu0 0
        %588 = vmatpush1.bf16.msra.mxu0 %v547
        %589 = vmatprep.subr.bf16.mxu0 0
        %590 = vmatpush1.bf16.msra.mxu0 %v546
        %591 = vmatprep.subr.bf16.mxu0 0
        %592 = vmatpush1.bf16.msra.mxu0 %v545
        %593 = vmatprep.subr.bf16.mxu0 0
        %594 = vmatpush2.bf16.msra.mxu0 %v560
        %595 = vmatprep.subr.bf16.mxu0 0
        %596 = vmatpush2.bf16.msra.mxu0 %v559
        %597 = vmatprep.subr.bf16.mxu0 0
        %598 = vmatpush2.bf16.msra.mxu0 %v558
        %599 = vmatprep.subr.bf16.mxu0 0
        %600 = vmatpush2.bf16.msra.mxu0 %v557
        %601 = vmatprep.subr.bf16.mxu0 0
        %602 = vmatpush2.bf16.msra.mxu0 %v556
        %603 = vmatprep.subr.bf16.mxu0 0
        %604 = vmatpush2.bf16.msra.mxu0 %v555
        %605 = vmatprep.subr.bf16.mxu0 0
        %606 = vmatpush2.bf16.msra.mxu0 %v554
        %607 = vmatprep.subr.bf16.mxu0 0
        %608 = vmatpush2.bf16.msra.mxu0 %v553
        %609 = vmatprep.mubr.bf16.mxu0 %v450
        %610 = vmatmul.mubr.bf16.gmra.mxu0 %v449
        %v611 = vpop.f32.mrf.mxu0
        %v612 = vadd.f32 %v399, %v611
        %v613 = vpop.f32.mrf.mxu0
        %v614 = vpop.f32.mrf.mxu0
        %v615 = vadd.f32 %v399, %v614
        %v616 = vpop.f32.mrf.mxu0
        %617 = vmatprep.mubr.bf16.mxu0 %v452
        %618 = vmatmul.mubr.bf16.gmra.mxu0 %v451
        %v619 = vpop.f32.mrf.mxu0
        %v620 = vadd.f32 %v399, %v619
        %v621 = vpop.f32.mrf.mxu0
        %v622 = vpop.f32.mrf.mxu0
        %v623 = vadd.f32 %v399, %v622
        %v624 = vpop.f32.mrf.mxu0
        %625 = vmatprep.mubr.bf16.mxu0 %v454
        %626 = vmatmul.mubr.bf16.gmra.mxu0 %v453
        %v627 = vpop.f32.mrf.mxu0
        %v628 = vadd.f32 %v399, %v627
        %v629 = vpop.f32.mrf.mxu0
        %v630 = vpop.f32.mrf.mxu0
        %v631 = vadd.f32 %v399, %v630
        %v632 = vpop.f32.mrf.mxu0
        %633 = vmatprep.mubr.bf16.mxu0 %v456
        %634 = vmatmul.mubr.bf16.gmra.mxu0 %v455
        %v635 = vpop.f32.mrf.mxu0
        %v636 = vadd.f32 %v399, %v635
        %v637 = vpop.f32.mrf.mxu0
        %v638 = vpop.f32.mrf.mxu0
        %v639 = vadd.f32 %v399, %v638
        %v640 = vpop.f32.mrf.mxu0
        %641 = vmatprep.mubr.bf16.mxu0 %v458
        %642 = vmatmul.mubr.bf16.gmra.mxu0 %v457
        %v643 = vpop.f32.mrf.mxu0
        %v644 = vadd.f32 %v399, %v643
        %v645 = vpop.f32.mrf.mxu0
        %v646 = vpop.f32.mrf.mxu0
        %v647 = vadd.f32 %v399, %v646
        %v648 = vpop.f32.mrf.mxu0
        %649 = vmatprep.mubr.bf16.mxu0 %v460
        %650 = vmatmul.mubr.bf16.gmra.mxu0 %v459
        %v651 = vpop.f32.mrf.mxu0
        %v652 = vadd.f32 %v399, %v651
        %v653 = vpop.f32.mrf.mxu0
        %v654 = vpop.f32.mrf.mxu0
        %v655 = vadd.f32 %v399, %v654
        %v656 = vpop.f32.mrf.mxu0
        %657 = vmatprep.mubr.bf16.mxu0 %v462
        %658 = vmatmul.mubr.bf16.gmra.mxu0 %v461
        %v659 = vpop.f32.mrf.mxu0
        %v660 = vadd.f32 %v399, %v659
        %v661 = vpop.f32.mrf.mxu0
        %v662 = vpop.f32.mrf.mxu0
        %v663 = vadd.f32 %v399, %v662
        %v664 = vpop.f32.mrf.mxu0
        %665 = vmatprep.mubr.bf16.mxu0 %v464
        %666 = vmatmul.mubr.bf16.gmra.mxu0 %v463
        %v667 = vpop.f32.mrf.mxu0
        %v668 = vadd.f32 %v399, %v667
        %v669 = vpop.f32.mrf.mxu0
        %v670 = vpop.f32.mrf.mxu0
        %v671 = vadd.f32 %v399, %v670
        %v672 = vpop.f32.mrf.mxu0
        %673 = vdwg.mxu0
        %v674 = vmax.f32 %v612, 0.0
        %v675 = vmax.f32 %v615, 0.0
        %v676 = vmax.f32 %v620, 0.0
        %v677 = vmax.f32 %v623, 0.0
        %v678 = vmax.f32 %v628, 0.0
        %v679 = vmax.f32 %v631, 0.0
        %v680 = vmax.f32 %v636, 0.0
        %v681 = vmax.f32 %v639, 0.0
        %v682 = vmax.f32 %v644, 0.0
        %v683 = vmax.f32 %v647, 0.0
        %v684 = vmax.f32 %v652, 0.0
        %v685 = vmax.f32 %v655, 0.0
        %v686 = vmax.f32 %v660, 0.0
        %v687 = vmax.f32 %v663, 0.0
        %v688 = vmax.f32 %v668, 0.0
        %v689 = vmax.f32 %v671, 0.0
        %v690 = vpack.c.bf16 %v675, %v674
        %v691 = vpack.c.bf16 %v677, %v676
        %v692 = vpack.c.bf16 %v679, %v678
        %v693 = vpack.c.bf16 %v681, %v680
        %v694 = vpack.c.bf16 %v683, %v682
        %v695 = vpack.c.bf16 %v685, %v684
        %v696 = vpack.c.bf16 %v687, %v686
        %v697 = vpack.c.bf16 %v689, %v688
        %v698 = vld [vmem:[%s3] sm:$0xf]
        %v699 = vld [vmem:[%s3 + $0x4] sm:$0xf]
        %v700 = vld [vmem:[%s3 + $0x8] sm:$0xf]
        %v701 = vld [vmem:[%s3 + $0xc] sm:$0xf]
        %v702 = vld [vmem:[%s3 + $0x10] sm:$0xf]
        %v703 = vld [vmem:[%s3 + $0x14] sm:$0xf]
        %v704 = vld [vmem:[%s3 + $0x18] sm:$0xf]
        %v705 = vld [vmem:[%s3 + $0x1c] sm:$0xf]
        %v706 = vld [vmem:[%s3 + $0x20] sm:$0xf]
        %v707 = vld [vmem:[%s3 + $0x24] sm:$0xf]
        %v708 = vld [vmem:[%s3 + $0x28] sm:$0xf]
        %v709 = vld [vmem:[%s3 + $0x2c] sm:$0xf]
        %v710 = vld [vmem:[%s3 + $0x30] sm:$0xf]
        %v711 = vld [vmem:[%s3 + $0x34] sm:$0xf]
        %v712 = vld [vmem:[%s3 + $0x38] sm:$0xf]
        %v713 = vld [vmem:[%s3 + $0x3c] sm:$0xf]
        %v714 = vld [vmem:[%s4] sm:$0x1]
        %v716 = vlaneseq
        %v717 = vshrl.u32 %v716, 7
        %v718 = vsub.s32 0, %v717
        %v719 = vrot.slane %v714, %v718
        %v737 = vunpack.c.l.b16 %v698
        %v738 = vunpack.c.l.b16 %v699
        %v739 = vunpack.c.l.b16 %v700
        %v740 = vunpack.c.l.b16 %v701
        %v741 = vunpack.c.l.b16 %v702
        %v742 = vunpack.c.l.b16 %v703
        %v743 = vunpack.c.l.b16 %v704
        %v744 = vunpack.c.l.b16 %v705
        %v745 = vunpack.c.l.b16 %v706
        %v746 = vunpack.c.l.b16 %v707
        %v747 = vunpack.c.l.b16 %v708
        %v748 = vunpack.c.l.b16 %v709
        %v749 = vunpack.c.l.b16 %v710
        %v750 = vunpack.c.l.b16 %v711
        %v751 = vunpack.c.l.b16 %v712
        %v752 = vunpack.c.l.b16 %v713
        %v753 = vpack.c.b16 %v738, %v737
        %v754 = vpack.c.b16 %v740, %v739
        %v755 = vpack.c.b16 %v742, %v741
        %v756 = vpack.c.b16 %v744, %v743
        %v757 = vpack.c.b16 %v746, %v745
        %v758 = vpack.c.b16 %v748, %v747
        %v759 = vpack.c.b16 %v750, %v749
        %v760 = vpack.c.b16 %v752, %v751
        %769 = vmatprep.subr.bf16.mxu0 0
        %770 = vmatpush1.bf16.msra.mxu0 %v760
        %771 = vmatprep.subr.bf16.mxu0 0
        %772 = vmatpush1.bf16.msra.mxu0 %v759
        %773 = vmatprep.subr.bf16.mxu0 0
        %774 = vmatpush1.bf16.msra.mxu0 %v758
        %775 = vmatprep.subr.bf16.mxu0 0
        %776 = vmatpush1.bf16.msra.mxu0 %v757
        %777 = vmatprep.subr.bf16.mxu0 0
        %778 = vmatpush1.bf16.msra.mxu0 %v756
        %779 = vmatprep.subr.bf16.mxu0 0
        %780 = vmatpush1.bf16.msra.mxu0 %v755
        %781 = vmatprep.subr.bf16.mxu0 0
        %782 = vmatpush1.bf16.msra.mxu0 %v754
        %783 = vmatprep.subr.bf16.mxu0 0
        %784 = vmatpush1.bf16.msra.mxu0 %v753
        %785 = vmatprep.subr.bf16.mxu0 0
        %786 = vmatpush2.bf16.msra.mxu0 0
        %787 = vmatprep.subr.bf16.mxu0 0
        %788 = vmatpush2.bf16.msra.mxu0 0
        %789 = vmatprep.subr.bf16.mxu0 0
        %790 = vmatpush2.bf16.msra.mxu0 0
        %791 = vmatprep.subr.bf16.mxu0 0
        %792 = vmatpush2.bf16.msra.mxu0 0
        %793 = vmatprep.subr.bf16.mxu0 0
        %794 = vmatpush2.bf16.msra.mxu0 0
        %795 = vmatprep.subr.bf16.mxu0 0
        %796 = vmatpush2.bf16.msra.mxu0 0
        %797 = vmatprep.subr.bf16.mxu0 0
        %798 = vmatpush2.bf16.msra.mxu0 0
        %799 = vmatprep.subr.bf16.mxu0 0
        %800 = vmatpush2.bf16.msra.mxu0 0
        %801 = vmatprep.mubr.bf16.mxu0 0
        %802 = vmatmul.mubr.bf16.gmra.mxu0 %v690
        %v803 = vpop.f32.mrf.mxu0
        %v804 = vadd.f32 %v719, %v803
        %v805 = vpop.f32.mrf.mxu0
        %v806 = vpop.f32.mrf.mxu0
        %v807 = vadd.f32 %v719, %v806
        %v808 = vpop.f32.mrf.mxu0
        %809 = vmatprep.mubr.bf16.mxu0 0
        %810 = vmatmul.mubr.bf16.gmra.mxu0 %v691
        %v811 = vpop.f32.mrf.mxu0
        %v812 = vadd.f32 %v719, %v811
        %v813 = vpop.f32.mrf.mxu0
        %v814 = vpop.f32.mrf.mxu0
        %v815 = vadd.f32 %v719, %v814
        %v816 = vpop.f32.mrf.mxu0
        %817 = vmatprep.mubr.bf16.mxu0 0
        %818 = vmatmul.mubr.bf16.gmra.mxu0 %v692
        %v819 = vpop.f32.mrf.mxu0
        %v820 = vadd.f32 %v719, %v819
        %v821 = vpop.f32.mrf.mxu0
        %v822 = vpop.f32.mrf.mxu0
        %v823 = vadd.f32 %v719, %v822
        %v824 = vpop.f32.mrf.mxu0
        %825 = vmatprep.mubr.bf16.mxu0 0
        %826 = vmatmul.mubr.bf16.gmra.mxu0 %v693
        %v827 = vpop.f32.mrf.mxu0
        %v828 = vadd.f32 %v719, %v827
        %v829 = vpop.f32.mrf.mxu0
        %v830 = vpop.f32.mrf.mxu0
        %v831 = vadd.f32 %v719, %v830
        %v832 = vpop.f32.mrf.mxu0
        %833 = vmatprep.mubr.bf16.mxu0 0
        %834 = vmatmul.mubr.bf16.gmra.mxu0 %v694
        %v835 = vpop.f32.mrf.mxu0
        %v836 = vadd.f32 %v719, %v835
        %v837 = vpop.f32.mrf.mxu0
        %v838 = vpop.f32.mrf.mxu0
        %v839 = vadd.f32 %v719, %v838
        %v840 = vpop.f32.mrf.mxu0
        %841 = vmatprep.mubr.bf16.mxu0 0
        %842 = vmatmul.mubr.bf16.gmra.mxu0 %v695
        %v843 = vpop.f32.mrf.mxu0
        %v844 = vadd.f32 %v719, %v843
        %v845 = vpop.f32.mrf.mxu0
        %v846 = vpop.f32.mrf.mxu0
        %v847 = vadd.f32 %v719, %v846
        %v848 = vpop.f32.mrf.mxu0
        %849 = vmatprep.mubr.bf16.mxu0 0
        %850 = vmatmul.mubr.bf16.gmra.mxu0 %v696
        %v851 = vpop.f32.mrf.mxu0
        %v852 = vadd.f32 %v719, %v851
        %v853 = vpop.f32.mrf.mxu0
        %v854 = vpop.f32.mrf.mxu0
        %v855 = vadd.f32 %v719, %v854
        %v856 = vpop.f32.mrf.mxu0
        %857 = vmatprep.mubr.bf16.mxu0 0
        %858 = vmatmul.mubr.bf16.gmra.mxu0 %v697
        %v859 = vpop.f32.mrf.mxu0
        %v860 = vadd.f32 %v719, %v859
        %v861 = vpop.f32.mrf.mxu0
        %v862 = vpop.f32.mrf.mxu0
        %v863 = vadd.f32 %v719, %v862
        %v864 = vpop.f32.mrf.mxu0
        %865 = vdwg.mxu0
        %v866 = vmax.f32 %v804, 0.0
        %v867 = vmax.f32 %v807, 0.0
        %v868 = vmax.f32 %v812, 0.0
        %v869 = vmax.f32 %v815, 0.0
        %v870 = vmax.f32 %v820, 0.0
        %v871 = vmax.f32 %v823, 0.0
        %v872 = vmax.f32 %v828, 0.0
        %v873 = vmax.f32 %v831, 0.0
        %v874 = vmax.f32 %v836, 0.0
        %v875 = vmax.f32 %v839, 0.0
        %v876 = vmax.f32 %v844, 0.0
        %v877 = vmax.f32 %v847, 0.0
        %v878 = vmax.f32 %v852, 0.0
        %v879 = vmax.f32 %v855, 0.0
        %v880 = vmax.f32 %v860, 0.0
        %v881 = vmax.f32 %v863, 0.0
        %v882 = vpack.c.bf16 %v867, %v866
        %v883 = vpack.c.bf16 %v869, %v868
        %v884 = vpack.c.bf16 %v871, %v870
        %v885 = vpack.c.bf16 %v873, %v872
        %v886 = vpack.c.bf16 %v875, %v874
        %v887 = vpack.c.bf16 %v877, %v876
        %v888 = vpack.c.bf16 %v879, %v878
        %v889 = vpack.c.bf16 %v881, %v880
        %v890 = vld [vmem:[%s5] sm:$0xf]
        %v891 = vld [vmem:[%s5 + $0x4] sm:$0xf]
        %v892 = vld [vmem:[%s5 + $0x8] sm:$0xf]
        %v893 = vld [vmem:[%s5 + $0xc] sm:$0xf]
        %v894 = vld [vmem:[%s5 + $0x10] sm:$0xf]
        %v895 = vld [vmem:[%s5 + $0x14] sm:$0xf]
        %v896 = vld [vmem:[%s5 + $0x18] sm:$0xf]
        %v897 = vld [vmem:[%s5 + $0x1c] sm:$0xf]
        %v898 = vld [vmem:[%s5 + $0x20] sm:$0xf]
        %v899 = vld [vmem:[%s5 + $0x24] sm:$0xf]
        %v900 = vld [vmem:[%s5 + $0x28] sm:$0xf]
        %v901 = vld [vmem:[%s5 + $0x2c] sm:$0xf]
        %v902 = vld [vmem:[%s5 + $0x30] sm:$0xf]
        %v903 = vld [vmem:[%s5 + $0x34] sm:$0xf]
        %v904 = vld [vmem:[%s5 + $0x38] sm:$0xf]
        %v905 = vld [vmem:[%s5 + $0x3c] sm:$0xf]
        %v906 = vld [vmem:[#allocation2] sm:$0x1]
        %v908 = vlaneseq
        %v909 = vshrl.u32 %v908, 7
        %v910 = vsub.s32 0, %v909
        %v911 = vrot.slane %v906, %v910
        %v929 = vunpack.c.l.b16 %v890
        %v930 = vunpack.c.l.b16 %v891
        %v931 = vunpack.c.l.b16 %v892
        %v932 = vunpack.c.l.b16 %v893
        %v933 = vunpack.c.l.b16 %v894
        %v934 = vunpack.c.l.b16 %v895
        %v935 = vunpack.c.l.b16 %v896
        %v936 = vunpack.c.l.b16 %v897
        %v937 = vunpack.c.l.b16 %v898
        %v938 = vunpack.c.l.b16 %v899
        %v939 = vunpack.c.l.b16 %v900
        %v940 = vunpack.c.l.b16 %v901
        %v941 = vunpack.c.l.b16 %v902
        %v942 = vunpack.c.l.b16 %v903
        %v943 = vunpack.c.l.b16 %v904
        %v944 = vunpack.c.l.b16 %v905
        %v945 = vpack.c.b16 %v930, %v929
        %v946 = vpack.c.b16 %v932, %v931
        %v947 = vpack.c.b16 %v934, %v933
        %v948 = vpack.c.b16 %v936, %v935
        %v949 = vpack.c.b16 %v938, %v937
        %v950 = vpack.c.b16 %v940, %v939
        %v951 = vpack.c.b16 %v942, %v941
        %v952 = vpack.c.b16 %v944, %v943
        %961 = vmatprep.subr.bf16.mxu0 0
        %962 = vmatpush1.bf16.msra.mxu0 %v952
        %963 = vmatprep.subr.bf16.mxu0 0
        %964 = vmatpush1.bf16.msra.mxu0 %v951
        %965 = vmatprep.subr.bf16.mxu0 0
        %966 = vmatpush1.bf16.msra.mxu0 %v950
        %967 = vmatprep.subr.bf16.mxu0 0
        %968 = vmatpush1.bf16.msra.mxu0 %v949
        %969 = vmatprep.subr.bf16.mxu0 0
        %970 = vmatpush1.bf16.msra.mxu0 %v948
        %971 = vmatprep.subr.bf16.mxu0 0
        %972 = vmatpush1.bf16.msra.mxu0 %v947
        %973 = vmatprep.subr.bf16.mxu0 0
        %974 = vmatpush1.bf16.msra.mxu0 %v946
        %975 = vmatprep.subr.bf16.mxu0 0
        %976 = vmatpush1.bf16.msra.mxu0 %v945
        %977 = vmatprep.subr.bf16.mxu0 0
        %978 = vmatpush2.bf16.msra.mxu0 0
        %979 = vmatprep.subr.bf16.mxu0 0
        %980 = vmatpush2.bf16.msra.mxu0 0
        %981 = vmatprep.subr.bf16.mxu0 0
        %982 = vmatpush2.bf16.msra.mxu0 0
        %983 = vmatprep.subr.bf16.mxu0 0
        %984 = vmatpush2.bf16.msra.mxu0 0
        %985 = vmatprep.subr.bf16.mxu0 0
        %986 = vmatpush2.bf16.msra.mxu0 0
        %987 = vmatprep.subr.bf16.mxu0 0
        %988 = vmatpush2.bf16.msra.mxu0 0
        %989 = vmatprep.subr.bf16.mxu0 0
        %990 = vmatpush2.bf16.msra.mxu0 0
        %991 = vmatprep.subr.bf16.mxu0 0
        %992 = vmatpush2.bf16.msra.mxu0 0
        %993 = vmatprep.mubr.bf16.mxu0 0
        %994 = vmatmul.mubr.bf16.gmra.mxu0 %v882
        %v995 = vpop.f32.mrf.mxu0
        %v996 = vadd.f32 %v911, %v995
        %v997 = vpop.f32.mrf.mxu0
        %v998 = vpop.f32.mrf.mxu0
        %v999 = vadd.f32 %v911, %v998
        %v1000 = vpop.f32.mrf.mxu0
        %1001 = vmatprep.mubr.bf16.mxu0 0
        %1002 = vmatmul.mubr.bf16.gmra.mxu0 %v883
        %v1003 = vpop.f32.mrf.mxu0
        %v1004 = vadd.f32 %v911, %v1003
        %v1005 = vpop.f32.mrf.mxu0
        %v1006 = vpop.f32.mrf.mxu0
        %v1007 = vadd.f32 %v911, %v1006
        %v1008 = vpop.f32.mrf.mxu0
        %1009 = vmatprep.mubr.bf16.mxu0 0
        %1010 = vmatmul.mubr.bf16.gmra.mxu0 %v884
        %v1011 = vpop.f32.mrf.mxu0
        %v1012 = vadd.f32 %v911, %v1011
        %v1013 = vpop.f32.mrf.mxu0
        %v1014 = vpop.f32.mrf.mxu0
        %v1015 = vadd.f32 %v911, %v1014
        %v1016 = vpop.f32.mrf.mxu0
        %1017 = vmatprep.mubr.bf16.mxu0 0
        %1018 = vmatmul.mubr.bf16.gmra.mxu0 %v885
        %v1019 = vpop.f32.mrf.mxu0
        %v1020 = vadd.f32 %v911, %v1019
        %v1021 = vpop.f32.mrf.mxu0
        %v1022 = vpop.f32.mrf.mxu0
        %v1023 = vadd.f32 %v911, %v1022
        %v1024 = vpop.f32.mrf.mxu0
        %1025 = vmatprep.mubr.bf16.mxu0 0
        %1026 = vmatmul.mubr.bf16.gmra.mxu0 %v886
        %v1027 = vpop.f32.mrf.mxu0
        %v1028 = vadd.f32 %v911, %v1027
        %v1029 = vpop.f32.mrf.mxu0
        %v1030 = vpop.f32.mrf.mxu0
        %v1031 = vadd.f32 %v911, %v1030
        %v1032 = vpop.f32.mrf.mxu0
        %1033 = vmatprep.mubr.bf16.mxu0 0
        %1034 = vmatmul.mubr.bf16.gmra.mxu0 %v887
        %v1035 = vpop.f32.mrf.mxu0
        %v1036 = vadd.f32 %v911, %v1035
        %v1037 = vpop.f32.mrf.mxu0
        %v1038 = vpop.f32.mrf.mxu0
        %v1039 = vadd.f32 %v911, %v1038
        %v1040 = vpop.f32.mrf.mxu0
        %1041 = vmatprep.mubr.bf16.mxu0 0
        %1042 = vmatmul.mubr.bf16.gmra.mxu0 %v888
        %v1043 = vpop.f32.mrf.mxu0
        %v1044 = vadd.f32 %v911, %v1043
        %v1045 = vpop.f32.mrf.mxu0
        %v1046 = vpop.f32.mrf.mxu0
        %v1047 = vadd.f32 %v911, %v1046
        %v1048 = vpop.f32.mrf.mxu0
        %1049 = vmatprep.mubr.bf16.mxu0 0
        %1050 = vmatmul.mubr.bf16.gmra.mxu0 %v889
        %v1051 = vpop.f32.mrf.mxu0
        %v1052 = vadd.f32 %v911, %v1051
        %v1053 = vpop.f32.mrf.mxu0
        %v1054 = vpop.f32.mrf.mxu0
        %v1055 = vadd.f32 %v911, %v1054
        %v1056 = vpop.f32.mrf.mxu0
        %1057 = vdwg.mxu0
        %vm1058 = vcmask 7168
        %1059 = vst.msk [vmem:[%s317] sm:$0xff] %vm1058, %v996
        %1060 = vst.msk [vmem:[%s317 + $0x8] sm:$0xff] %vm1058, %v999
        %1061 = vst.msk [vmem:[%s317 + $0x10] sm:$0xff] %vm1058, %v1004
        %1062 = vst.msk [vmem:[%s317 + $0x18] sm:$0xff] %vm1058, %v1007
        %1063 = vst.msk [vmem:[%s317 + $0x20] sm:$0xff] %vm1058, %v1012
        %1064 = vst.msk [vmem:[%s317 + $0x28] sm:$0xff] %vm1058, %v1015
        %1065 = vst.msk [vmem:[%s317 + $0x30] sm:$0xff] %vm1058, %v1020
        %1066 = vst.msk [vmem:[%s317 + $0x38] sm:$0xff] %vm1058, %v1023
        %1067 = vst.msk [vmem:[%s317 + $0x40] sm:$0xff] %vm1058, %v1028
        %1068 = vst.msk [vmem:[%s317 + $0x48] sm:$0xff] %vm1058, %v1031
        %1069 = vst.msk [vmem:[%s317 + $0x50] sm:$0xff] %vm1058, %v1036
        %1070 = vst.msk [vmem:[%s317 + $0x58] sm:$0xff] %vm1058, %v1039
        %1071 = vst.msk [vmem:[%s317 + $0x60] sm:$0xff] %vm1058, %v1044
        %1072 = vst.msk [vmem:[%s317 + $0x68] sm:$0xff] %vm1058, %v1047
        %1073 = vst.msk [vmem:[%s317 + $0x70] sm:$0xff] %vm1058, %v1052
        %1074 = vst.msk [vmem:[%s317 + $0x78] sm:$0xff] %vm1058, %v1055
        %s1075 = sand.u32 %s184, 1
        %s1076 = sand.u32 %s184, 1
        %s1077 = smul.addr %s1076, 128
        %s1078 = scalar_lea.vmem [#allocation7], %s1077
        // Predicated region
        $region57: #{tpu_custom_call.1} parent=47 // pred_check
          %p1079 = pneg %p194
        $region58: #{tpu_custom_call.1} parent=47 // pred_check_branch
          %1081 = sbr.rel (%p1079) target = $region60
        $region59: #{tpu_custom_call.1} parent=47 // pred_region
          %s1082 = smul.u32 16, %s24
          %s1083 = ssub.s32 25, %s1082
          %p1084 = scmp.lt.s32.totalorder %s1083, 16
          %s1085 = scalar_select %p1084, %s1083, 16
          %s1086 = smul.u32 128, %s1085
          %p1087 = scmp.ne.s32.totalorder 0, %s1086
          %s1088 = smul.addr %s1082, 8
          %s1089 = scalar_lea.vmem %s7, %s1088
          // Predicated region
          $region61: #{tpu_custom_call.1} parent=59 // pred_check
            %p1090 = pneg %p1087
          $region62: #{tpu_custom_call.1} parent=59 // pred_check_branch
            %1092 = sbr.rel (%p1090) target = $region64
          $region63: #{tpu_custom_call.1} parent=59 // pred_region
            // Predicated region
            $region65: #{tpu_custom_call.1} parent=63 // pred_check
              _
            $region66: #{tpu_custom_call.1} parent=63 // pred_check_branch
              %1094 = sbr.rel (0) target = $region68
            $region67: #{tpu_custom_call.1} parent=63 // pred_region
              // Predicated region
              $region87: #{tpu_custom_call.1} parent=67 // pred_check
                _
              $region88: #{tpu_custom_call.1} parent=67 // pred_check_branch
                %1174 = sbr.rel (0) target = $region90
              $region89: #{tpu_custom_call.1} parent=67 // pred_region
                %s1175 = sshrl.u32 %s1085, 4
                // While loop
                $region91: #{tpu_custom_call.1} parent=89 // loop_pre_header
                  _
                $region92: #{tpu_custom_call.1} parent=89 // loop_header
                  %s1177 = sphi 0, %s1179
                  %p1178 = scmp.ge.s32.totalorder %s1177, %s1175
                  %s1182 = sphi 0, %s1219
                  %s1183 = sphi %s1078, %s1222
                  %s1184 = sphi %s1089, %s1223
                $region93: #{tpu_custom_call.1} parent=89 // loop_header_branch
                  %1181 = sbr.rel (%p1178) target = $region97
                $region94: #{tpu_custom_call.1} parent=89 // loop_body
                  %v1185 = vld [vmem:[%s1183] sm:$0xff]
                  %1186 = vst [vmem:[%s1184] sm:$0xff] %v1185
                  %v1187 = vld [vmem:[%s1183 + $0x8] sm:$0xff]
                  %1188 = vst [vmem:[%s1184 + $0x8] sm:$0xff] %v1187
                  %v1189 = vld [vmem:[%s1183 + $0x10] sm:$0xff]
                  %1190 = vst [vmem:[%s1184 + $0x10] sm:$0xff] %v1189
                  %v1191 = vld [vmem:[%s1183 + $0x18] sm:$0xff]
                  %1192 = vst [vmem:[%s1184 + $0x18] sm:$0xff] %v1191
                  %v1193 = vld [vmem:[%s1183 + $0x20] sm:$0xff]
                  %1194 = vst [vmem:[%s1184 + $0x20] sm:$0xff] %v1193
                  %v1195 = vld [vmem:[%s1183 + $0x28] sm:$0xff]
                  %1196 = vst [vmem:[%s1184 + $0x28] sm:$0xff] %v1195
                  %v1197 = vld [vmem:[%s1183 + $0x30] sm:$0xff]
                  %1198 = vst [vmem:[%s1184 + $0x30] sm:$0xff] %v1197
                  %v1199 = vld [vmem:[%s1183 + $0x38] sm:$0xff]
                  %1200 = vst [vmem:[%s1184 + $0x38] sm:$0xff] %v1199
                  %v1201 = vld [vmem:[%s1183 + $0x40] sm:$0xff]
                  %1202 = vst [vmem:[%s1184 + $0x40] sm:$0xff] %v1201
                  %v1203 = vld [vmem:[%s1183 + $0x48] sm:$0xff]
                  %1204 = vst [vmem:[%s1184 + $0x48] sm:$0xff] %v1203
                  %v1205 = vld [vmem:[%s1183 + $0x50] sm:$0xff]
                  %1206 = vst [vmem:[%s1184 + $0x50] sm:$0xff] %v1205
                  %v1207 = vld [vmem:[%s1183 + $0x58] sm:$0xff]
                  %1208 = vst [vmem:[%s1184 + $0x58] sm:$0xff] %v1207
                  %v1209 = vld [vmem:[%s1183 + $0x60] sm:$0xff]
                  %1210 = vst [vmem:[%s1184 + $0x60] sm:$0xff] %v1209
                  %v1211 = vld [vmem:[%s1183 + $0x68] sm:$0xff]
                  %1212 = vst [vmem:[%s1184 + $0x68] sm:$0xff] %v1211
                  %v1213 = vld [vmem:[%s1183 + $0x70] sm:$0xff]
                  %1214 = vst [vmem:[%s1184 + $0x70] sm:$0xff] %v1213
                  %v1215 = vld [vmem:[%s1183 + $0x78] sm:$0xff]
                  %1216 = vst [vmem:[%s1184 + $0x78] sm:$0xff] %v1215
                  %s1217 = sadd.s32 1, %s1182
                  %p1218 = scmp.ge.s32.totalorder %s1217, %s1175
                  %s1219 = scalar_select %p1218, 0, %s1217
                  %s1220 = smul.u32 %s1219, 128
                  %s1221 = smul.u32 %s1219, 128
                  %s1222 = scalar_lea.vmem %s1078, %s1220 [#allocation7]
                  %s1223 = scalar_lea.vmem %s1089, %s1221
                $region95: #{tpu_custom_call.1} parent=89 // loop_footer
                  %s1179 = sadd.s32 %s1177, 1
                $region96: #{tpu_custom_call.1} parent=89 // loop_footer_branch
                  %1176 = sbr.rel target = $region92
                $region97: #{tpu_custom_call.1} parent=89 // loop_exit
                  _
                %s1224 = sshrl.u32 %s1085, 4
                %s1225 = sand.u32 %s1085, 15
                %s1226 = smul.u32 %s1224, 16
                %s1227 = smul.u32 8, %s1226
                %s1228 = scalar_lea.vmem %s1078, %s1227 [#allocation7]
                %s1229 = smul.u32 8, %s1226
                %s1230 = scalar_lea.vmem %s1089, %s1229
                // While loop
                $region98: #{tpu_custom_call.1} parent=89 // loop_pre_header
                  _
                $region99: #{tpu_custom_call.1} parent=89 // loop_header
                  %s1232 = sphi 0, %s1234
                  %p1233 = scmp.ge.s32.totalorder %s1232, %s1225
                  %s1237 = sphi 0, %s1244
                  %s1238 = sphi %s1228, %s1247
                  %s1239 = sphi %s1230, %s1248
                $region100: #{tpu_custom_call.1} parent=89 // loop_header_branch
                  %1236 = sbr.rel (%p1233) target = $region104
                $region101: #{tpu_custom_call.1} parent=89 // loop_body
                  %v1240 = vld [vmem:[%s1238] sm:$0xff]
                  %1241 = vst [vmem:[%s1239] sm:$0xff] %v1240
                  %s1242 = sadd.s32 1, %s1237
                  %p1243 = scmp.ge.s32.totalorder %s1242, %s1225
                  %s1244 = scalar_select %p1243, 0, %s1242
                  %s1245 = smul.u32 %s1244, 8
                  %s1246 = smul.u32 %s1244, 8
                  %s1247 = scalar_lea.vmem %s1228, %s1245 [#allocation7]
                  %s1248 = scalar_lea.vmem %s1230, %s1246
                $region102: #{tpu_custom_call.1} parent=89 // loop_footer
                  %s1234 = sadd.s32 %s1232, 1
                $region103: #{tpu_custom_call.1} parent=89 // loop_footer_branch
                  %1231 = sbr.rel target = $region99
                $region104: #{tpu_custom_call.1} parent=89 // loop_exit
                  _
              $region90: #{tpu_custom_call.1} parent=67 // pred_fallthru
                _
              // Predicated region
              $region105: #{tpu_custom_call.1} parent=67 // pred_check
                _
              $region106: #{tpu_custom_call.1} parent=67 // pred_check_branch
                %1250 = sbr.rel target = $region108
              $region107: #{tpu_custom_call.1} parent=67 // pred_region
                _
              $region108: #{tpu_custom_call.1} parent=67 // pred_fallthru
                _
            $region68: #{tpu_custom_call.1} parent=63 // pred_fallthru
              _
            // Predicated region
            $region69: #{tpu_custom_call.1} parent=63 // pred_check
              _
            $region70: #{tpu_custom_call.1} parent=63 // pred_check_branch
              %1096 = sbr.rel target = $region72
            $region71: #{tpu_custom_call.1} parent=63 // pred_region
              %s1098 = ssub.s32 256, 1
              %s1099 = sshrl.u32 %s1085, 4
              // While loop
              $region73: #{tpu_custom_call.1} parent=71 // loop_pre_header
                _
              $region74: #{tpu_custom_call.1} parent=71 // loop_header
                %s1101 = sphi 0, %s1103
                %p1102 = scmp.ge.s32.totalorder %s1101, %s1099
                %s1106 = sphi 0, %s1143
                %s1107 = sphi %s1078, %s1146
                %s1108 = sphi %s1089, %s1147
              $region75: #{tpu_custom_call.1} parent=71 // loop_header_branch
                %1105 = sbr.rel (%p1102) target = $region79
              $region76: #{tpu_custom_call.1} parent=71 // loop_body
                %v1109 = vld [vmem:[%s1107] sm:%s1098]
                %1110 = vst [vmem:[%s1108] sm:%s1098] %v1109
                %v1111 = vld [vmem:[%s1107 + $0x8] sm:%s1098]
                %1112 = vst [vmem:[%s1108 + $0x8] sm:%s1098] %v1111
                %v1113 = vld [vmem:[%s1107 + $0x10] sm:%s1098]
                %1114 = vst [vmem:[%s1108 + $0x10] sm:%s1098] %v1113
                %v1115 = vld [vmem:[%s1107 + $0x18] sm:%s1098]
                %1116 = vst [vmem:[%s1108 + $0x18] sm:%s1098] %v1115
                %v1117 = vld [vmem:[%s1107 + $0x20] sm:%s1098]
                %1118 = vst [vmem:[%s1108 + $0x20] sm:%s1098] %v1117
                %v1119 = vld [vmem:[%s1107 + $0x28] sm:%s1098]
                %1120 = vst [vmem:[%s1108 + $0x28] sm:%s1098] %v1119
                %v1121 = vld [vmem:[%s1107 + $0x30] sm:%s1098]
                %1122 = vst [vmem:[%s1108 + $0x30] sm:%s1098] %v1121
                %v1123 = vld [vmem:[%s1107 + $0x38] sm:%s1098]
                %1124 = vst [vmem:[%s1108 + $0x38] sm:%s1098] %v1123
                %v1125 = vld [vmem:[%s1107 + $0x40] sm:%s1098]
                %1126 = vst [vmem:[%s1108 + $0x40] sm:%s1098] %v1125
                %v1127 = vld [vmem:[%s1107 + $0x48] sm:%s1098]
                %1128 = vst [vmem:[%s1108 + $0x48] sm:%s1098] %v1127
                %v1129 = vld [vmem:[%s1107 + $0x50] sm:%s1098]
                %1130 = vst [vmem:[%s1108 + $0x50] sm:%s1098] %v1129
                %v1131 = vld [vmem:[%s1107 + $0x58] sm:%s1098]
                %1132 = vst [vmem:[%s1108 + $0x58] sm:%s1098] %v1131
                %v1133 = vld [vmem:[%s1107 + $0x60] sm:%s1098]
                %1134 = vst [vmem:[%s1108 + $0x60] sm:%s1098] %v1133
                %v1135 = vld [vmem:[%s1107 + $0x68] sm:%s1098]
                %1136 = vst [vmem:[%s1108 + $0x68] sm:%s1098] %v1135
                %v1137 = vld [vmem:[%s1107 + $0x70] sm:%s1098]
                %1138 = vst [vmem:[%s1108 + $0x70] sm:%s1098] %v1137
                %v1139 = vld [vmem:[%s1107 + $0x78] sm:%s1098]
                %1140 = vst [vmem:[%s1108 + $0x78] sm:%s1098] %v1139
                %s1141 = sadd.s32 1, %s1106
                %p1142 = scmp.ge.s32.totalorder %s1141, %s1099
                %s1143 = scalar_select %p1142, 0, %s1141
                %s1144 = smul.u32 %s1143, 128
                %s1145 = smul.u32 %s1143, 128
                %s1146 = scalar_lea.vmem %s1078, %s1144 [#allocation7]
                %s1147 = scalar_lea.vmem %s1089, %s1145
              $region77: #{tpu_custom_call.1} parent=71 // loop_footer
                %s1103 = sadd.s32 %s1101, 1
              $region78: #{tpu_custom_call.1} parent=71 // loop_footer_branch
                %1100 = sbr.rel target = $region74
              $region79: #{tpu_custom_call.1} parent=71 // loop_exit
                _
              %s1148 = sshrl.u32 %s1085, 4
              %s1149 = sand.u32 %s1085, 15
              %s1150 = smul.u32 %s1148, 16
              %s1151 = smul.u32 8, %s1150
              %s1152 = scalar_lea.vmem %s1078, %s1151 [#allocation7]
              %s1153 = smul.u32 8, %s1150
              %s1154 = scalar_lea.vmem %s1089, %s1153
              // While loop
              $region80: #{tpu_custom_call.1} parent=71 // loop_pre_header
                _
              $region81: #{tpu_custom_call.1} parent=71 // loop_header
                %s1156 = sphi 0, %s1158
                %p1157 = scmp.ge.s32.totalorder %s1156, %s1149
                %s1161 = sphi 0, %s1168
                %s1162 = sphi %s1152, %s1171
                %s1163 = sphi %s1154, %s1172
              $region82: #{tpu_custom_call.1} parent=71 // loop_header_branch
                %1160 = sbr.rel (%p1157) target = $region86
              $region83: #{tpu_custom_call.1} parent=71 // loop_body
                %v1164 = vld [vmem:[%s1162] sm:%s1098]
                %1165 = vst [vmem:[%s1163] sm:%s1098] %v1164
                %s1166 = sadd.s32 1, %s1161
                %p1167 = scmp.ge.s32.totalorder %s1166, %s1149
                %s1168 = scalar_select %p1167, 0, %s1166
                %s1169 = smul.u32 %s1168, 8
                %s1170 = smul.u32 %s1168, 8
                %s1171 = scalar_lea.vmem %s1152, %s1169 [#allocation7]
                %s1172 = scalar_lea.vmem %s1154, %s1170
              $region84: #{tpu_custom_call.1} parent=71 // loop_footer
                %s1158 = sadd.s32 %s1156, 1
              $region85: #{tpu_custom_call.1} parent=71 // loop_footer_branch
                %1155 = sbr.rel target = $region81
              $region86: #{tpu_custom_call.1} parent=71 // loop_exit
                _
            $region72: #{tpu_custom_call.1} parent=63 // pred_fallthru
              _
          $region64: #{tpu_custom_call.1} parent=59 // pred_fallthru
            _
          %1251 = vnop
        $region60: #{tpu_custom_call.1} parent=47 // pred_fallthru
          _
      $region48: #{tpu_custom_call.1} parent=5 // pred_fallthru
        _
      %p1252 = scmp.le.s32.totalorder 2, %s19
      // Predicated region
      $region109: #{tpu_custom_call.1} parent=5 // pred_check
        %p1253 = pneg %p1252
      $region110: #{tpu_custom_call.1} parent=5 // pred_check_branch
        %1255 = sbr.rel (%p1253) target = $region112
      $region111: #{tpu_custom_call.1} parent=5 // pred_region
        %s1256 = ssub.s32 %s19, 2
        // Predicated region
        $region113: #{tpu_custom_call.1} parent=111 // pred_check
          %p1257 = pneg %p200
        $region114: #{tpu_custom_call.1} parent=111 // pred_check_branch
          %1259 = sbr.rel (%p1257) target = $region116
        $region115: #{tpu_custom_call.1} parent=111 // pred_region
          %s1260 = sand.u32 %s185, 1
          %s1261 = sand.u32 %s185, 1
          %s1262 = smul.addr %s1261, 128
          %s1263 = scalar_lea.vmem [#allocation7], %s1262
        $region116: #{tpu_custom_call.1} parent=111 // pred_fallthru
          _
      $region112: #{tpu_custom_call.1} parent=5 // pred_fallthru
        _
    $region6: #{tpu_custom_call.1} parent=1 // loop_footer
      %s23 = sadd.s32 1, %s19
    $region7: #{tpu_custom_call.1} parent=1 // loop_footer_branch
      %18 = sbr.rel target = $region3
    $region8: #{tpu_custom_call.1} parent=1 // loop_exit
      _
    %1264 = vsyncpa [#allocation4], 1
    %s1265 = scalar_lea.sflag [#allocation4], 1
    %1266 = vsyncpa %s1265, 1
    %1267 = vsyncpa [#allocation6], 1

</llo_original>
